<compile_context>
chip_gen: v7x
topology: tpu7x:2x2x1
jax: 0.10.0
libtpu: 0.0.40
codegen_flags: <defaults>
</compile_context>

<pallas_src>
import functools

import numpy as np
import jax
import jax.numpy as jnp
from jax import lax
from jax.experimental import pallas as pl
from jax.experimental.pallas import tpu as pltpu


_VMEM_LIMIT_BYTES = 48 * 1024 * 1024    # explicit scoped limit (< v7x 64 MiB physical)
_BLOCK_VMEM_BUDGET = 24 * 1024 * 1024   # double-buffered block budget (~half the limit)


# ------------------------------ Pallas kernel -------------------------------

def _dispreg_kernel(x_ref, out_ref, vol_ref, *, div):
    # x_ref block: (1, D, T) -- D disparities on sublanes, T spatial on lanes.
    x = x_ref[0]                                                    # (D, T)
    # Disparity ramp with div folded in; tiny (D, 1) column, lane-broadcast.
    d = (lax.broadcasted_iota(jnp.int32, (x.shape[0], 1), 0)
         .astype(x.dtype) * div)                                    # (D, 1)
    xd = x * d                                                      # x * disp * div
    vol_ref[0] = xd.astype(vol_ref.dtype)                           # out_vol block
    out_ref[0] = jnp.sum(xd, axis=0, keepdims=True).astype(out_ref.dtype)  # (1, T)


def _pick_lane_tile(hw, d, n, itemsize):
    """Largest multiple-of-128 lane tile fitting the double-buffered VMEM budget."""
    hw128 = -(-hw // 128) * 128
    # per-step VMEM bytes ~= 2 buffers * T * (x: D rows + vol: D rows + out: 1 row)
    t_cap = _BLOCK_VMEM_BUDGET // (2 * (2 * d + 1) * itemsize)
    t = min(t_cap, hw128)
    t = max(128, (t // 128) * 128)
    # v7x megacore balance: avoid collapsing to a single grid block if avoidable.
    while n * (-(-hw128 // t)) < 2 and t > 128:
        t = max(128, ((t // 2) // 128) * 128)
    return t


def disparity_regression(x_ndhw, maxdisp, div, out_vol_dtype=None):
    """Returns (out, out_vol) matching disparityregression.forward."""
    N, D, H, W = x_ndhw.shape
    assert D == maxdisp
    HW = H * W
    itemsize = jnp.dtype(x_ndhw.dtype).itemsize
    out_dtype = x_ndhw.dtype
    vol_dtype = out_vol_dtype if out_vol_dtype is not None else x_ndhw.dtype

    lane_tile = _pick_lane_tile(HW, D, N, itemsize)
    n_tiles = -(-HW // lane_tile)
    HW_pad = n_tiles * lane_tile

    x_flat = x_ndhw.reshape(N, D, HW)
    if HW_pad != HW:
        # Zero-pad the spatial axis: keeps lane-dense unmasked stores and a
        # bounded block size; padded columns are sliced off afterwards.
        x_flat = jnp.pad(x_flat, ((0, 0), (0, 0), (0, HW_pad - HW)))

    grid = (N, n_tiles)

    out_flat, vol_flat = pl.pallas_call(
        functools.partial(_dispreg_kernel, div=float(div)),
        out_shape=(
            jax.ShapeDtypeStruct((N, 1, HW_pad), out_dtype),   # out
            jax.ShapeDtypeStruct((N, D, HW_pad), vol_dtype),   # out_vol
        ),
        grid_spec=pltpu.PrefetchScalarGridSpec(
            num_scalar_prefetch=0,
            grid=grid,
            in_specs=[
                pl.BlockSpec((1, D, lane_tile), lambda n, t: (n, 0, t)),
            ],
            out_specs=[
                pl.BlockSpec((1, 1, lane_tile), lambda n, t: (n, 0, t)),
                pl.BlockSpec((1, D, lane_tile), lambda n, t: (n, 0, t)),
            ],
        ),
        compiler_params=pltpu.CompilerParams(
            dimension_semantics=("parallel", "parallel"),
            vmem_limit_bytes=_VMEM_LIMIT_BYTES),
    )(x_flat)

    if HW_pad != HW:
        out_flat = out_flat[:, :, :HW]
        vol_flat = vol_flat[:, :, :HW]

    out = out_flat.reshape(N, 1, H, W)
    out_vol = vol_flat.reshape(N, D, H, W)
    return out, out_vol


# --------------------------- pure-JAX reference -----------------------------

def reference(x, div):
    N, D, H, W = x.shape
    disp = jnp.arange(D, dtype=x.dtype).reshape(1, D, 1, 1)
    out_vol = x * disp * div
    out = jnp.sum(x * disp, axis=1, keepdims=True) * div
    return out, out_vol


# ---------------------------------- main ------------------------------------

if __name__ == "__main__":
    N, maxdisp, H, W = 2, 4, 16, 16
    div = 0.25

    key = jax.random.PRNGKey(0)
    logits = jax.random.normal(key, (N, maxdisp, H, W), jnp.float32)
    x = jax.nn.softmax(logits, axis=1)   # cost-volume probabilities, as in use

    out, out_vol = disparity_regression(x, maxdisp, div)
    out = jax.block_until_ready(out)
    out_vol = jax.block_until_ready(out_vol)

    ref_out, ref_vol = reference(x, div)
    np.testing.assert_allclose(np.asarray(out), np.asarray(ref_out),
                               rtol=1e-6, atol=1e-6)
    np.testing.assert_allclose(np.asarray(out_vol), np.asarray(ref_vol),
                               rtol=1e-6, atol=1e-6)
    print("KERNEL_OK")
</pallas_src>

<mosaic_0001>
module attributes {stable_mosaic.version = 11 : i64} {
  func.func @_dispreg_kernel(%arg0: i32, %arg1: i32, %arg2: memref<1x4x256xf32, #tpu.memory_space<vmem>>, %arg3: memref<1x1x256xf32, #tpu.memory_space<vmem>>, %arg4: memref<1x4x256xf32, #tpu.memory_space<vmem>>) attributes {dimension_semantics = [#tpu.dimension_semantics<parallel>, #tpu.dimension_semantics<parallel>], iteration_bounds = array<i64: 2, 1>, scalar_prefetch = 0 : i64, scratch_operands = 0 : i64, tpu.core_type = #tpu.core_type<tc>, window_params = [{transform_indices = @transform_0, window_bounds = array<i64: 1, 4, 256>}, {transform_indices = @transform_1, window_bounds = array<i64: 1, 1, 256>}, {transform_indices = @transform_2, window_bounds = array<i64: 1, 4, 256>}]} {
    %c0 = arith.constant 0 : index
    %c0_0 = arith.constant 0 : index
    %c0_1 = arith.constant 0 : index
    %0 = vector.load %arg2[%c0, %c0_0, %c0_1] : memref<1x4x256xf32, #tpu.memory_space<vmem>>, vector<1x4x256xf32>
    %1 = vector.shape_cast %0 : vector<1x4x256xf32> to vector<4x256xf32>
    %2 = tpu.iota {dimensions = array<i32: 0>} : vector<4x1xi32>
    %3 = arith.sitofp %2 : vector<4x1xi32> to vector<4x1xf32>
    %cst = arith.constant 2.500000e-01 : f32
    %4 = vector.broadcast %cst : f32 to vector<4x1xf32>
    %5 = arith.mulf %3, %4 : vector<4x1xf32>
    %6 = vector.broadcast %5 : vector<4x1xf32> to vector<4x256xf32>
    %7 = arith.mulf %1, %6 : vector<4x256xf32>
    %c0_2 = arith.constant 0 : index
    %c0_3 = arith.constant 0 : index
    %c0_4 = arith.constant 0 : index
    %8 = vector.load %arg4[%c0_2, %c0_3, %c0_4] : memref<1x4x256xf32, #tpu.memory_space<vmem>>, vector<1x4x256xf32>
    %9 = vector.shape_cast %8 : vector<1x4x256xf32> to vector<4x256xf32>
    %10 = vector.shape_cast %7 : vector<4x256xf32> to vector<1x4x256xf32>
    tpu.vector_store %arg4[%c0_2, %c0_3, %c0_4], %10 {strides = array<i32>} : memref<1x4x256xf32, #tpu.memory_space<vmem>>, vector<1x4x256xf32>,
    %cst_5 = arith.constant dense<0.000000e+00> : vector<256xf32>
    %11 = vector.multi_reduction <add>, %7, %cst_5 [0] : vector<4x256xf32> to vector<256xf32>
    %12 = vector.shape_cast %11 : vector<256xf32> to vector<1x256xf32>
    %c0_6 = arith.constant 0 : index
    %c0_7 = arith.constant 0 : index
    %c0_8 = arith.constant 0 : index
    %13 = vector.load %arg3[%c0_6, %c0_7, %c0_8] : memref<1x1x256xf32, #tpu.memory_space<vmem>>, vector<1x1x256xf32>
    %14 = vector.shape_cast %13 : vector<1x1x256xf32> to vector<1x256xf32>
    %15 = vector.shape_cast %12 : vector<1x256xf32> to vector<1x1x256xf32>
    tpu.vector_store %arg3[%c0_6, %c0_7, %c0_8], %15 {strides = array<i32>} : memref<1x1x256xf32, #tpu.memory_space<vmem>>, vector<1x1x256xf32>,
    return
  }
  func.func @transform_0(%arg0: i32, %arg1: i32) -> (i32, i32, i32) {
    %c0_i32 = arith.constant 0 : i32
    %c0_i32_0 = arith.constant 0 : i32
    return %arg0, %c0_i32, %arg1 : i32, i32, i32
  }
  func.func @transform_1(%arg0: i32, %arg1: i32) -> (i32, i32, i32) {
    %c0_i32 = arith.constant 0 : i32
    %c0_i32_0 = arith.constant 0 : i32
    return %arg0, %c0_i32, %arg1 : i32, i32, i32
  }
  func.func @transform_2(%arg0: i32, %arg1: i32) -> (i32, i32, i32) {
    %c0_i32 = arith.constant 0 : i32
    %c0_i32_0 = arith.constant 0 : i32
    return %arg0, %c0_i32, %arg1 : i32, i32, i32
  }
}

</mosaic_0001>

<llo_original>
// kernel: tpu_custom_call.1
$region0: #{tpu_custom_call.1}
  #allocation0 [shape = 'u32[]', space=smem, size = 0x4, offset = 0x4, fixed_abs, tag = 'smem constant byte address 0x4 - core index']
  #allocation1 [shape = 'u32[144,128]{1,0:T(1,128)}', space=vmem, size = 0x12000, scoped, tag = 'internal scratch']
  %s0 = inlined_call_operand.hbm [shape: f32[2,4,256], index: 0, kind: input, shape index: {}]
  %s1 = inlined_call_operand.hbm [shape: f32[2,1,256], index: 1, kind: output, shape index: {0}]
  %s2 = inlined_call_operand.hbm [shape: f32[2,4,256], index: 2, kind: output, shape index: {1}]
  %3 = xla_tuple %s1, %s2
  %s4 = sld [smem:[#allocation0]]
  $region49: #{tpu_custom_call.1} parent=0
    _
  %s6 = ssub.s32 1, %s4
  %s7 = scalar_select 0, %s6, %s4
  $region1: #{tpu_custom_call.1} parent=0
    #allocation2 [shape = 'u8[8192]{0}', space=vmem, size = 0x2000, scoped, tag = 'input window, operand 0']
    #allocation3 [shape = 's32[2]{0}', space=sflag, size = 0x8, scoped, tag = 'scoped memory for tpu_custom_call.1']
    #allocation4 [shape = 's32[2]{0}', space=sflag, size = 0x8, scoped, tag = 'scoped memory for tpu_custom_call.1']
    #allocation5 [shape = 'u8[2048]{0}', space=vmem, size = 0x800, scoped, tag = 'output window, operand 0']
    #allocation6 [shape = 'u8[8192]{0}', space=vmem, size = 0x2000, scoped, tag = 'output window, operand 1']
    #allocation7 [shape = 's32[2]{0}', space=sflag, size = 0x8, scoped, tag = 'scoped memory for tpu_custom_call.1']
    %8 = vsyncpa [#allocation3], 0
    %s9 = scalar_lea.sflag [#allocation3], 1
    %10 = vsyncpa %s9, 0
    %11 = vsyncpa [#allocation4], 0
    %s12 = scalar_lea.sflag [#allocation4], 1
    %13 = vsyncpa %s12, 0
    %14 = vsyncpa [#allocation7], 0
    %s15 = scalar_lea.sflag [#allocation7], 1
    %16 = vsyncpa %s15, 0
    loop: start=0, step=1, limit=4
    $region2: #{tpu_custom_call.1} parent=1 // loop_pre_header
      _
    $region3: #{tpu_custom_call.1} parent=1 // loop_header
      %s18 = sphi 0, %s22
      %p19 = scmp.ge.s32.totalorder %s18, 4
      %s25 = sphi 0, %s37
      %s26 = sphi 0, %s33
      %s27 = sphi 0, %s25
      %s28 = sphi 0, %s26
      %s29 = sphi 0, %s27
      %s30 = sphi 0, %s28
      %s42 = sphi 0, %s44
      %s45 = sphi 0, %s42
      %s46 = sphi 0, %s45
      %s62 = sphi 0, %s46
      %s70 = sphi 0, %s72
      %s73 = sphi 0, %s70
      %s74 = sphi 0, %s73
      %s90 = sphi 0, %s74
      %s98 = sphi 0, %s100
      %s101 = sphi 0, %s98
      %s102 = sphi 0, %s101
      %s118 = sphi 0, %s102
    $region4: #{tpu_custom_call.1} parent=1 // loop_header_branch
      %21 = sbr.rel (%p19) target = $region8
    $region5: #{tpu_custom_call.1} parent=1 // loop_body
      %s23 = ssub.s32 %s18, 1
      %s24 = ssub.s32 %s18, 2
      %s31 = sadd.s32 1, %s26
      %p32 = scmp.ge.s32.totalorder %s31, 1
      %s33 = scalar_select %p32, 0, %s31
      %s34 = sadd.s32 1, %s25
      %s35 = scalar_select %p32, %s34, %s25
      %p36 = scmp.ge.s32.totalorder %s35, 2
      %s37 = scalar_select %p36, 0, %s35
      %s38 = ssub.s32 %s25, %s37
      %s39 = ssub.s32 %s26, %s33
      %s40 = sor.u32 %s38, %s39
      %p41 = scmp.eq.s32.totalorder %s40, 0
      %s43 = sadd.s32 %s42, 1
      %s44 = scalar_select %p41, %s42, %s43
      %p47 = pneg %p41
      %p48 = scmp.eq.s32.totalorder %s18, 1
      %p49 = por %p47, %p48
      %p50 = scmp.ne.s32.totalorder %s42, %s45
      %p51 = scmp.eq.s32.totalorder %s18, 0
      %p52 = por %p50, %p51
      %p53 = scmp.ne.s32.totalorder %s42, %s45
      %p54 = scmp.eq.s32.totalorder %s23, 1
      %p55 = por %p53, %p54
      %p56 = scmp.ne.s32.totalorder %s45, %s46
      %p57 = scmp.eq.s32.totalorder %s23, 0
      %p58 = por %p56, %p57
      %p59 = scmp.ne.s32.totalorder %s45, %s46
      %p60 = scmp.eq.s32.totalorder %s24, 1
      %p61 = por %p59, %p60
      %p63 = scmp.ne.s32.totalorder %s46, %s62
      %p64 = scmp.eq.s32.totalorder %s24, 0
      %p65 = por %p63, %p64
      %s66 = ssub.s32 %s25, %s37
      %s67 = ssub.s32 %s26, %s33
      %s68 = sor.u32 %s66, %s67
      %p69 = scmp.eq.s32.totalorder %s68, 0
      %s71 = sadd.s32 %s70, 1
      %s72 = scalar_select %p69, %s70, %s71
      %p75 = pneg %p69
      %p76 = scmp.eq.s32.totalorder %s18, 1
      %p77 = por %p75, %p76
      %p78 = scmp.ne.s32.totalorder %s70, %s73
      %p79 = scmp.eq.s32.totalorder %s18, 0
      %p80 = por %p78, %p79
      %p81 = scmp.ne.s32.totalorder %s70, %s73
      %p82 = scmp.eq.s32.totalorder %s23, 1
      %p83 = por %p81, %p82
      %p84 = scmp.ne.s32.totalorder %s73, %s74
      %p85 = scmp.eq.s32.totalorder %s23, 0
      %p86 = por %p84, %p85
      %p87 = scmp.ne.s32.totalorder %s73, %s74
      %p88 = scmp.eq.s32.totalorder %s24, 1
      %p89 = por %p87, %p88
      %p91 = scmp.ne.s32.totalorder %s74, %s90
      %p92 = scmp.eq.s32.totalorder %s24, 0
      %p93 = por %p91, %p92
      %s94 = ssub.s32 %s25, %s37
      %s95 = ssub.s32 %s26, %s33
      %s96 = sor.u32 %s94, %s95
      %p97 = scmp.eq.s32.totalorder %s96, 0
      %s99 = sadd.s32 %s98, 1
      %s100 = scalar_select %p97, %s98, %s99
      %p103 = pneg %p97
      %p104 = scmp.eq.s32.totalorder %s18, 1
      %p105 = por %p103, %p104
      %p106 = scmp.ne.s32.totalorder %s98, %s101
      %p107 = scmp.eq.s32.totalorder %s18, 0
      %p108 = por %p106, %p107
      %p109 = scmp.ne.s32.totalorder %s98, %s101
      %p110 = scmp.eq.s32.totalorder %s23, 1
      %p111 = por %p109, %p110
      %p112 = scmp.ne.s32.totalorder %s101, %s102
      %p113 = scmp.eq.s32.totalorder %s23, 0
      %p114 = por %p112, %p113
      %p115 = scmp.ne.s32.totalorder %s101, %s102
      %p116 = scmp.eq.s32.totalorder %s24, 1
      %p117 = por %p115, %p116
      %p119 = scmp.ne.s32.totalorder %s102, %s118
      %p120 = scmp.eq.s32.totalorder %s24, 0
      %p121 = por %p119, %p120
      %p122 = scmp.le.s32.totalorder 1, %s18
      %p123 = scmp.lt.s32.totalorder %s18, 3
      %p124 = pnand %p122, %p123
      %p125 = pneg %p124
      // Predicated region
      $region9: #{tpu_custom_call.1} parent=5 // pred_check
        _
      $region10: #{tpu_custom_call.1} parent=5 // pred_check_branch
        %127 = sbr.rel (%p124) target = $region12
      $region11: #{tpu_custom_call.1} parent=5 // pred_region
        %s128 = ssub.s32 %s18, 1
      $region12: #{tpu_custom_call.1} parent=5 // pred_fallthru
        _
      %p129 = scmp.lt.s32.totalorder %s18, 2
      // Predicated region
      $region13: #{tpu_custom_call.1} parent=5 // pred_check
        %p130 = pneg %p129
      $region14: #{tpu_custom_call.1} parent=5 // pred_check_branch
        %132 = sbr.rel (%p130) target = $region16
      $region15: #{tpu_custom_call.1} parent=5 // pred_region
        // Predicated region
        $region17: #{tpu_custom_call.1} parent=15 // pred_check
          %p133 = pneg %p52
        $region18: #{tpu_custom_call.1} parent=15 // pred_check_branch
          %135 = sbr.rel (%p133) target = $region20
        $region19: #{tpu_custom_call.1} parent=15 // pred_region
          %s136 = sand.u32 %s42, 1
          %s137 = scalar_lea.sflag [#allocation3], %s136
          %s138 = sand.u32 %s42, 1
          %s139 = smul.addr %s138, 8
          %s140 = scalar_lea.vmem [#allocation2], %s139
          %s141 = smul.u32 2, %s26
          %s143 = ssub.s32 128, 128
          %144 = vsyncadd %s137, %s143
          %s145 = smul.addr %s25, 2
          %s146 = sadd.s32 %s141, %s145
          %s147 = smul.addr %s146, 64
          %s148 = scalar_lea.hbm %s0, %s147
          %s150 = sshll.u32 %s140, 4
          %s151 = int_to_ptr.vmem [resolvable:$true] %s150
          %153 = dma.hbm_to_vmem [thread:$0]  %s148, 128, %s151, %s137
        $region20: #{tpu_custom_call.1} parent=15 // pred_fallthru
          _
      $region16: #{tpu_custom_call.1} parent=5 // pred_fallthru
        _
      %p154 = scmp.le.s32.totalorder 1, %s18
      %p155 = scmp.lt.s32.totalorder %s18, 3
      %p156 = pnand %p154, %p155
      %p157 = pneg %p156
      // Predicated region
      $region21: #{tpu_custom_call.1} parent=5 // pred_check
        _
      $region22: #{tpu_custom_call.1} parent=5 // pred_check_branch
        %159 = sbr.rel (%p156) target = $region24
      $region23: #{tpu_custom_call.1} parent=5 // pred_region
        %s160 = ssub.s32 %s18, 1
        %s161 = sand.u32 %s45, 1
        %s162 = scalar_lea.sflag [#allocation3], %s161
        %s163 = sand.u32 %s45, 1
        %s164 = smul.addr %s163, 8
        %s165 = scalar_lea.vmem [#allocation2], %s164
        // Predicated region
        $region25: #{tpu_custom_call.1} parent=23 // pred_check
          %p166 = pneg %p58
        $region26: #{tpu_custom_call.1} parent=23 // pred_check_branch
          %168 = sbr.rel (%p166) target = $region28
        $region27: #{tpu_custom_call.1} parent=23 // pred_region
          %169 = dma.done %s162, 128
        $region28: #{tpu_custom_call.1} parent=23 // pred_fallthru
          _
        %s170 = sand.u32 %s45, 1
        %s171 = scalar_lea.sflag [#allocation3], %s170
        %s172 = sand.u32 %s45, 1
        %s173 = smul.addr %s172, 8
        %s174 = scalar_lea.vmem [#allocation2], %s173
        %p175 = pneg %p58
        %p176 = pneg %p55
        %p177 = pneg %p86
        %p178 = pneg %p83
        %s179 = sand.u32 %s73, 1
        %s180 = scalar_lea.sflag [#allocation4], %s179
        %s181 = sand.u32 %s73, 1
        %s182 = smul.addr %s181, 2
        %s183 = scalar_lea.vmem [#allocation5], %s182
        %p184 = pneg %p114
        %p185 = pneg %p111
        %s186 = sand.u32 %s101, 1
        %s187 = scalar_lea.sflag [#allocation7], %s186
        %s188 = sand.u32 %s101, 1
        %s189 = smul.addr %s188, 8
        %s190 = scalar_lea.vmem [#allocation6], %s189
        %s191 = smul.u32 2, %s28
        %s192 = smul.u32 2, %s28
        %s193 = smul.u32 2, %s28
        %v194 = vld [vmem:[%s165] sm:$0xff]
        %v195 = vlaneseq
        %v196 = vshrl.u32 %v195, 7
        %v197 = vcvt.s32.f32 %v196
        %v198 = vmul.f32 %v197, 0.25
        %v201 = vunpack.c.l.s4 839922192
        %v202 = vunpack.c.0.s8 %v201
        %v203 = vlaneseq
        %v204 = vshrl.u32 %v203, 7
        %v205 = vsub.s32 %v202, %v204
        %v206 = vrot.slane %v198, %v205
        %v208 = vmul.f32 %v194, %v206
        %209 = vst [vmem:[%s190] sm:$0xff] %v208
        %v211 = vcombine.high %v208, %v208
        %vm213 = vcmask 1043456
        %v214 = vsel %vm213, %v208, 0.0
        %v215 = vrot.slane %v214, 4
        %v216 = vadd.f32 %v214, %v215
        %v217 = vrot.slane %v216, 2
        %v218 = vadd.f32 %v216, %v217
        %v219 = vrot.slane %v218, 1
        %v220 = vadd.f32 %v218, %v219
        %v221 = vsel %vm213, %v211, 0.0
        %v222 = vrot.slane %v221, 4
        %v223 = vadd.f32 %v221, %v222
        %v224 = vrot.slane %v223, 2
        %v225 = vadd.f32 %v223, %v224
        %v226 = vrot.slane %v225, 1
        %v227 = vadd.f32 %v225, %v226
        %v230 = vcombine.low %v220, %v227
        %v232 = vunpack.c.l.s4 1966171168
        %v233 = vunpack.c.0.s8 %v232
        %v234 = vlaneseq
        %v235 = vshrl.u32 %v234, 7
        %v236 = vsub.s32 %v233, %v235
        %v237 = vrot.slane %v230, %v236
        %v239 = vunpack.c.l.s4 1966171168
        %v240 = vunpack.c.0.s8 %v239
        %v241 = vlaneseq
        %v242 = vshrl.u32 %v241, 7
        %v243 = vsub.s32 %v240, %v242
        %v244 = vrot.slane %v237, %v243
        %v246 = vlaneseq
        %vm247 = vcmp.ge.s32.totalorder %v246, 0
        %vm248 = vcmp.lt.s32.totalorder %v246, 256
        %vm249 = vmand %vm247, %vm248
        %250 = vst.msk [vmem:[%s183] sm:$0x3] %vm249, %v244
        %s251 = sand.u32 %s73, 1
        %s252 = scalar_lea.sflag [#allocation4], %s251
        %s253 = sand.u32 %s73, 1
        %s254 = smul.addr %s253, 2
        %s255 = scalar_lea.vmem [#allocation5], %s254
        %s256 = sand.u32 %s101, 1
        %s257 = scalar_lea.sflag [#allocation7], %s256
        %s258 = sand.u32 %s101, 1
        %s259 = smul.addr %s258, 8
        %s260 = scalar_lea.vmem [#allocation6], %s259
        // Predicated region
        $region29: #{tpu_custom_call.1} parent=23 // pred_check
          %p261 = pneg %p83
        $region30: #{tpu_custom_call.1} parent=23 // pred_check_branch
          %263 = sbr.rel (%p261) target = $region32
        $region31: #{tpu_custom_call.1} parent=23 // pred_region
          %s264 = smul.u32 2, %s28
          %s266 = ssub.s32 32, 32
          %267 = vsyncadd %s252, %s266
          %s268 = smul.addr %s27, 2
          %s269 = sadd.s32 %s264, %s268
          %s270 = smul.addr %s269, 16
          %s271 = scalar_lea.hbm %s1, %s270
          %s273 = sshll.u32 %s255, 4
          %s274 = int_to_ptr.vmem [resolvable:$true] %s273
          %276 = dma.vmem_to_hbm [thread:$0]  %s274, 32, %s271, %s252
        $region32: #{tpu_custom_call.1} parent=23 // pred_fallthru
          _
        // Predicated region
        $region33: #{tpu_custom_call.1} parent=23 // pred_check
          %p277 = pneg %p111
        $region34: #{tpu_custom_call.1} parent=23 // pred_check_branch
          %279 = sbr.rel (%p277) target = $region36
        $region35: #{tpu_custom_call.1} parent=23 // pred_region
          %s280 = smul.u32 2, %s28
          %s282 = ssub.s32 128, 128
          %283 = vsyncadd %s257, %s282
          %s284 = smul.addr %s27, 2
          %s285 = sadd.s32 %s280, %s284
          %s286 = smul.addr %s285, 64
          %s287 = scalar_lea.hbm %s2, %s286
          %s289 = sshll.u32 %s260, 4
          %s290 = int_to_ptr.vmem [resolvable:$true] %s289
          %292 = dma.vmem_to_hbm [thread:$0]  %s290, 128, %s287, %s257
        $region36: #{tpu_custom_call.1} parent=23 // pred_fallthru
          _
      $region24: #{tpu_custom_call.1} parent=5 // pred_fallthru
        _
      %p293 = scmp.le.s32.totalorder 2, %s18
      // Predicated region
      $region37: #{tpu_custom_call.1} parent=5 // pred_check
        %p294 = pneg %p293
      $region38: #{tpu_custom_call.1} parent=5 // pred_check_branch
        %296 = sbr.rel (%p294) target = $region40
      $region39: #{tpu_custom_call.1} parent=5 // pred_region
        %s297 = ssub.s32 %s18, 2
        // Predicated region
        $region41: #{tpu_custom_call.1} parent=39 // pred_check
          %p298 = pneg %p89
        $region42: #{tpu_custom_call.1} parent=39 // pred_check_branch
          %300 = sbr.rel (%p298) target = $region44
        $region43: #{tpu_custom_call.1} parent=39 // pred_region
          %s301 = sand.u32 %s74, 1
          %s302 = scalar_lea.sflag [#allocation4], %s301
          %s303 = sand.u32 %s74, 1
          %s304 = smul.addr %s303, 2
          %s305 = scalar_lea.vmem [#allocation5], %s304
          %306 = dma.done %s302, 32
        $region44: #{tpu_custom_call.1} parent=39 // pred_fallthru
          _
        // Predicated region
        $region45: #{tpu_custom_call.1} parent=39 // pred_check
          %p307 = pneg %p117
        $region46: #{tpu_custom_call.1} parent=39 // pred_check_branch
          %309 = sbr.rel (%p307) target = $region48
        $region47: #{tpu_custom_call.1} parent=39 // pred_region
          %s310 = sand.u32 %s102, 1
          %s311 = scalar_lea.sflag [#allocation7], %s310
          %s312 = sand.u32 %s102, 1
          %s313 = smul.addr %s312, 8
          %s314 = scalar_lea.vmem [#allocation6], %s313
          %315 = dma.done %s311, 128
        $region48: #{tpu_custom_call.1} parent=39 // pred_fallthru
          _
      $region40: #{tpu_custom_call.1} parent=5 // pred_fallthru
        _
    $region6: #{tpu_custom_call.1} parent=1 // loop_footer
      %s22 = sadd.s32 1, %s18
    $region7: #{tpu_custom_call.1} parent=1 // loop_footer_branch
      %17 = sbr.rel target = $region3
    $region8: #{tpu_custom_call.1} parent=1 // loop_exit
      _
    %316 = vsyncpa [#allocation3], 1
    %s317 = scalar_lea.sflag [#allocation3], 1
    %318 = vsyncpa %s317, 1
    %319 = vsyncpa [#allocation4], 1
    %s320 = scalar_lea.sflag [#allocation4], 1
    %321 = vsyncpa %s320, 1
    %322 = vsyncpa [#allocation7], 1
    %s323 = scalar_lea.sflag [#allocation7], 1
    %324 = vsyncpa %s323, 1

</llo_original>
